<compile_context>
chip_gen: v7x
topology: tpu7x:2x2x1
jax: 0.10.0
libtpu: 0.0.40
codegen_flags: <defaults>
</compile_context>

<pallas_src>
import jax
import jax.numpy as jnp
from jax.experimental import pallas as pl
from jax.experimental.pallas import tpu as pltpu

_INNER = 16        # true fc1 output width (nn.Linear(hidden_sz, 16))
_INNER_PAD = 128   # padded to one full lane width


def _round_up(n, m):
    return ((n + m - 1) // m) * m


def resfc_kernel(alpha_ref,    # SMEM (1, 1)   f32
                 x_ref,        # VMEM (TB, Hp) f32
                 w1_ref,       # VMEM (Hp, 128) bf16  (zero-padded cols >= 16)
                 b1_ref,       # VMEM (1, 128)  f32
                 w2_ref,       # VMEM (128, Hp) bf16  (zero-padded rows >= 16)
                 b2_ref,       # VMEM (1, Hp)   f32
                 o_ref):       # VMEM (TB, Hp)  f32
    x = x_ref[...]                                        # residual, f32
    alpha = alpha_ref[0, 0]                               # read once per tile

    # fc1: bf16 MXU matmul, f32 accumulation + f32 bias (2-D broadcast).
    t = jnp.dot(x.astype(jnp.bfloat16), w1_ref[...],
                preferred_element_type=jnp.float32) + b1_ref[...]
    # TODO(synk): nn.Dropout(do_rate) is identity in eval mode; training-mode dropout omitted.
    t = jnp.maximum(t, 0.05 * t)                          # F.leaky_relu(slope=0.05), f32
    # fc2: padded (zero) rows of w2 kill the padded fc1 columns.
    t = jnp.dot(t.astype(jnp.bfloat16), w2_ref[...],
                preferred_element_type=jnp.float32) + b2_ref[...]
    # scaled residual add
    o_ref[...] = t * alpha + x


def _choose_block_batch(B, Hp, weight_bytes):
    """Pick TB so each grid step moves a few MB and everything fits VMEM."""
    target_tile_bytes = 4 << 20                           # ~4 MB activation tile
    tb = _round_up(max(target_tile_bytes // (Hp * 4), 8), 8)
    tb = max(512, min(4096, tb))
    # VMEM guard: double-buffered x + out tiles plus (conservatively
    # double-buffered) weight slabs must stay well inside v7x's 64 MiB.
    budget = 40 << 20
    while tb > 8 and (4 * tb * Hp * 4 + 2 * weight_bytes) > budget:
        tb //= 2
    tb = max(8, _round_up(tb, 8))
    b8 = _round_up(max(B, 1), 8)
    tb = min(tb, b8)
    # Large batches: ensure >= 2 "parallel" grid steps so v7x megacore shards.
    if b8 >= 1024 and tb >= b8:
        tb = _round_up(-(-b8 // 2), 8)
    return tb


def resfc_forward(params, x):
    """x: (B, hidden_sz) f32 -> (B, hidden_sz) f32 (eval-mode forward)."""
    B, H = x.shape
    assert H == params["hidden"], (H, params["hidden"])
    Hp = params["hidden_pad"]

    weight_bytes = (params["w1"].size * 2 + params["w2"].size * 2
                    + params["b1"].size * 4 + params["b2"].size * 4)
    TB = _choose_block_batch(B, Hp, weight_bytes)
    nb = pl.cdiv(B, TB)

    if Hp != H:
        # Lane padding of the feature dim is unavoidable; the batch stays ragged.
        x_in = jnp.zeros((B, Hp), jnp.float32).at[:, :H].set(x)
    else:
        x_in = x                                            # no wrapper pad copy

    out = pl.pallas_call(
        resfc_kernel,
        out_shape=jax.ShapeDtypeStruct((B, Hp), jnp.float32),
        grid=(nb,),
        in_specs=[
            pl.BlockSpec((1, 1), lambda i: (0, 0),
                         memory_space=pltpu.MemorySpace.SMEM),     # alpha scalar
            pl.BlockSpec((TB, Hp), lambda i: (i, 0)),              # x tile
            pl.BlockSpec(params["w1"].shape, lambda i: (0, 0)),    # W1 bf16 (resident)
            pl.BlockSpec(params["b1"].shape, lambda i: (0, 0)),    # b1 f32
            pl.BlockSpec(params["w2"].shape, lambda i: (0, 0)),    # W2 bf16 (resident)
            pl.BlockSpec(params["b2"].shape, lambda i: (0, 0)),    # b2 f32
        ],
        out_specs=pl.BlockSpec((TB, Hp), lambda i: (i, 0)),
        compiler_params=pltpu.CompilerParams(
            dimension_semantics=("parallel",),
            # Explicit limit: above the v5e/v6e/v7x scoped defaults, below
            # v7x's 64 MiB physical VMEM. The TB guard keeps usage under it.
            vmem_limit_bytes=48 * 1024 * 1024),
    )(params["alpha"], x_in, params["w1"], params["b1"],
      params["w2"], params["b2"])

    return out[:, :H] if Hp != H else out


def pack_resfc_params(raw, hidden_sz):
    """Pre-cast weights to lane-dense bf16 (zero-padded); keep biases in f32."""
    Hp = _round_up(hidden_sz, 128)
    w1 = jnp.zeros((Hp, _INNER_PAD), jnp.float32)
    w1 = w1.at[:hidden_sz, :_INNER].set(raw["w1"]).astype(jnp.bfloat16)
    b1 = jnp.zeros((1, _INNER_PAD), jnp.float32).at[0, :_INNER].set(raw["b1"])
    w2 = jnp.zeros((_INNER_PAD, Hp), jnp.float32)
    w2 = w2.at[:_INNER, :hidden_sz].set(raw["w2"]).astype(jnp.bfloat16)
    b2 = jnp.zeros((1, Hp), jnp.float32).at[0, :hidden_sz].set(raw["b2"])
    return dict(
        w1=w1, b1=b1, w2=w2, b2=b2,
        alpha=jnp.full((1, 1), raw["alpha"], jnp.float32),
        hidden=hidden_sz,
        hidden_pad=Hp,
    )


def init_resfc_weights(key, hidden_sz=256):
    """Deterministic synthetic init matching nn.Linear's parameter shapes/ranges."""
    ks = jax.random.split(key, 4)
    bd1 = 1.0 / (hidden_sz ** 0.5)
    bd2 = 1.0 / (_INNER ** 0.5)
    return dict(
        w1=jax.random.uniform(ks[0], (hidden_sz, _INNER), jnp.float32, -bd1, bd1),
        b1=jax.random.uniform(ks[1], (_INNER,), jnp.float32, -bd1, bd1),
        w2=jax.random.uniform(ks[2], (_INNER, hidden_sz), jnp.float32, -bd2, bd2),
        b2=jax.random.uniform(ks[3], (hidden_sz,), jnp.float32, -bd2, bd2),
        alpha=jnp.float32(1e-05),       # nn.Parameter(torch.tensor(1e-05))
    )


def resfc_reference(raw, x):
    """Pure-JAX f32 reference of the PyTorch forward (eval mode)."""
    t = x @ raw["w1"] + raw["b1"]
    t = jnp.where(t >= 0, t, 0.05 * t)
    t = t @ raw["w2"] + raw["b2"]
    return t * raw["alpha"] + x


if __name__ == "__main__":
    key = jax.random.PRNGKey(0)
    wk, xk = jax.random.split(key)

    hidden_sz, batch = 256, 8           # module default hidden_sz=256
    raw = init_resfc_weights(wk, hidden_sz)
    params = pack_resfc_params(raw, hidden_sz)
    x = jax.random.normal(xk, (batch, hidden_sz), jnp.float32)

    out = resfc_forward(params, x)
    jax.block_until_ready(out)
    assert out.shape == (batch, hidden_sz) and out.dtype == jnp.float32

    # Correctness vs f32 reference (matmul inputs/weights are bf16, but
    # alpha=1e-5 shrinks the fc branch so the output error is ~1e-7 absolute).
    ref = resfc_reference(raw, x)
    assert jnp.allclose(out, ref, atol=1e-3, rtol=1e-3), float(jnp.max(jnp.abs(out - ref)))

    print("KERNEL_OK")
</pallas_src>

<mosaic_0001>
module attributes {stable_mosaic.version = 11 : i64} {
  func.func @resfc_kernel(%arg0: i32, %arg1: memref<1x1xf32, #tpu.memory_space<smem>>, %arg2: memref<8x256xf32, #tpu.memory_space<vmem>>, %arg3: memref<256x128xbf16, #tpu.memory_space<vmem>>, %arg4: memref<1x128xf32, #tpu.memory_space<vmem>>, %arg5: memref<128x256xbf16, #tpu.memory_space<vmem>>, %arg6: memref<1x256xf32, #tpu.memory_space<vmem>>, %arg7: memref<8x256xf32, #tpu.memory_space<vmem>>) attributes {dimension_semantics = [#tpu.dimension_semantics<parallel>], iteration_bounds = array<i64: 1>, scalar_prefetch = 0 : i64, scratch_operands = 0 : i64, tpu.core_type = #tpu.core_type<tc>, window_params = [{transform_indices = @transform_0, window_bounds = array<i64: 1, 1>}, {transform_indices = @transform_1, window_bounds = array<i64: 8, 256>}, {pipeline_mode = #tpu.pipeline_mode<synchronous>, transform_indices = @transform_2, window_bounds = array<i64: 256, 128>}, {pipeline_mode = #tpu.pipeline_mode<synchronous>, transform_indices = @transform_3, window_bounds = array<i64: 1, 128>}, {pipeline_mode = #tpu.pipeline_mode<synchronous>, transform_indices = @transform_4, window_bounds = array<i64: 128, 256>}, {pipeline_mode = #tpu.pipeline_mode<synchronous>, transform_indices = @transform_5, window_bounds = array<i64: 1, 256>}, {transform_indices = @transform_6, window_bounds = array<i64: 8, 256>}]} {
    %c0 = arith.constant 0 : index
    %c0_0 = arith.constant 0 : index
    %0 = vector.load %arg2[%c0, %c0_0] : memref<8x256xf32, #tpu.memory_space<vmem>>, vector<8x256xf32>
    %c0_1 = arith.constant 0 : index
    %c0_2 = arith.constant 0 : index
    %1 = memref.load %arg1[%c0_1, %c0_2] : memref<1x1xf32, #tpu.memory_space<smem>>
    %2 = arith.truncf %0 : vector<8x256xf32> to vector<8x256xbf16>
    %c0_3 = arith.constant 0 : index
    %c0_4 = arith.constant 0 : index
    %3 = vector.load %arg3[%c0_3, %c0_4] : memref<256x128xbf16, #tpu.memory_space<vmem>>, vector<256x128xbf16>
    %cst = arith.constant dense<0.000000e+00> : vector<8x128xf32>
    %4 = tpu.matmul %2, %3, %cst {dimension_numbers = #tpu.dot_dimension_numbers<[1], [0], [0], [1], [0, 0, 1, 1], [], []>} : vector<8x256xbf16>, vector<256x128xbf16>, vector<8x128xf32> -> vector<8x128xf32>
    %c0_5 = arith.constant 0 : index
    %c0_6 = arith.constant 0 : index
    %5 = vector.load %arg4[%c0_5, %c0_6] : memref<1x128xf32, #tpu.memory_space<vmem>>, vector<1x128xf32>
    %6 = vector.broadcast %5 : vector<1x128xf32> to vector<8x128xf32>
    %7 = arith.addf %4, %6 : vector<8x128xf32>
    %cst_7 = arith.constant 5.000000e-02 : f32
    %8 = vector.broadcast %cst_7 : f32 to vector<8x128xf32>
    %9 = arith.mulf %8, %7 : vector<8x128xf32>
    %10 = arith.maximumf %7, %9 : vector<8x128xf32>
    %11 = arith.truncf %10 : vector<8x128xf32> to vector<8x128xbf16>
    %c0_8 = arith.constant 0 : index
    %c0_9 = arith.constant 0 : index
    %12 = vector.load %arg5[%c0_8, %c0_9] : memref<128x256xbf16, #tpu.memory_space<vmem>>, vector<128x256xbf16>
    %cst_10 = arith.constant dense<0.000000e+00> : vector<8x256xf32>
    %13 = tpu.matmul %11, %12, %cst_10 {dimension_numbers = #tpu.dot_dimension_numbers<[1], [0], [0], [1], [0, 0, 1, 1], [], []>} : vector<8x128xbf16>, vector<128x256xbf16>, vector<8x256xf32> -> vector<8x256xf32>
    %c0_11 = arith.constant 0 : index
    %c0_12 = arith.constant 0 : index
    %14 = vector.load %arg6[%c0_11, %c0_12] : memref<1x256xf32, #tpu.memory_space<vmem>>, vector<1x256xf32>
    %15 = vector.broadcast %14 : vector<1x256xf32> to vector<8x256xf32>
    %16 = arith.addf %13, %15 : vector<8x256xf32>
    %17 = vector.broadcast %1 : f32 to vector<8x256xf32>
    %18 = arith.mulf %16, %17 : vector<8x256xf32>
    %19 = arith.addf %18, %0 : vector<8x256xf32>
    %c0_13 = arith.constant 0 : index
    %c0_14 = arith.constant 0 : index
    %20 = vector.load %arg7[%c0_13, %c0_14] : memref<8x256xf32, #tpu.memory_space<vmem>>, vector<8x256xf32>
    tpu.vector_store %arg7[%c0_13, %c0_14], %19 {strides = array<i32>} : memref<8x256xf32, #tpu.memory_space<vmem>>, vector<8x256xf32>,
    return
  }
  func.func @transform_0(%arg0: i32) -> (i32, i32) {
    %c0_i32 = arith.constant 0 : i32
    %c0_i32_0 = arith.constant 0 : i32
    %c0_i32_1 = arith.constant 0 : i32
    return %c0_i32, %c0_i32_0 : i32, i32
  }
  func.func @transform_1(%arg0: i32) -> (i32, i32) {
    %c0_i32 = arith.constant 0 : i32
    %c0_i32_0 = arith.constant 0 : i32
    return %arg0, %c0_i32 : i32, i32
  }
  func.func @transform_2(%arg0: i32) -> (i32, i32) {
    %c0_i32 = arith.constant 0 : i32
    %c0_i32_0 = arith.constant 0 : i32
    %c0_i32_1 = arith.constant 0 : i32
    return %c0_i32, %c0_i32_0 : i32, i32
  }
  func.func @transform_3(%arg0: i32) -> (i32, i32) {
    %c0_i32 = arith.constant 0 : i32
    %c0_i32_0 = arith.constant 0 : i32
    %c0_i32_1 = arith.constant 0 : i32
    return %c0_i32, %c0_i32_0 : i32, i32
  }
  func.func @transform_4(%arg0: i32) -> (i32, i32) {
    %c0_i32 = arith.constant 0 : i32
    %c0_i32_0 = arith.constant 0 : i32
    %c0_i32_1 = arith.constant 0 : i32
    return %c0_i32, %c0_i32_0 : i32, i32
  }
  func.func @transform_5(%arg0: i32) -> (i32, i32) {
    %c0_i32 = arith.constant 0 : i32
    %c0_i32_0 = arith.constant 0 : i32
    %c0_i32_1 = arith.constant 0 : i32
    return %c0_i32, %c0_i32_0 : i32, i32
  }
  func.func @transform_6(%arg0: i32) -> (i32, i32) {
    %c0_i32 = arith.constant 0 : i32
    %c0_i32_0 = arith.constant 0 : i32
    return %arg0, %c0_i32 : i32, i32
  }
}

</mosaic_0001>

<llo_original>
// kernel: tpu_custom_call.1
$region0: #{tpu_custom_call.1}
  #allocation0 [shape = 'u32[]', space=smem, size = 0x4, offset = 0x4, fixed_abs, tag = 'smem constant byte address 0x4 - core index']
  #allocation1 [shape = 'u32[144,128]{1,0:T(1,128)}', space=vmem, size = 0x12000, scoped, tag = 'internal scratch']
  #allocation2 [shape = 'f32[1,1]{1,0:T(1,128)S(6)}', space=smem, size = 0x200, scoped, tag = 'scoped memory for tpu_custom_call.1']
  %s0 = inlined_call_operand.<no memory space> [shape: f32[1,1], index: 0, kind: input, shape index: {}]
  %s1 = inlined_call_operand.hbm [shape: f32[8,256], index: 1, kind: input, shape index: {}]
  %s2 = inlined_call_operand.hbm [shape: bf16[256,128], index: 2, kind: input, shape index: {}]
  %s3 = inlined_call_operand.vmem [shape: f32[1,128], index: 3, kind: input, shape index: {}]
  %s4 = inlined_call_operand.hbm [shape: bf16[128,256], index: 4, kind: input, shape index: {}]
  %s5 = inlined_call_operand.vmem [shape: f32[1,256], index: 5, kind: input, shape index: {}]
  %s6 = inlined_call_operand.hbm [shape: f32[8,256], index: 6, kind: output, shape index: {}]
  %s7 = sld [smem:[#allocation0]]
  $region46: #{tpu_custom_call.1} parent=0
    _
  %s9 = ssub.s32 1, %s7
  %s10 = scalar_select 0, %s9, %s7
  %11 = sst [smem:[#allocation2]] %s0
  $region1: #{tpu_custom_call.1} parent=0
    #allocation3 [shape = 'u8[8192]{0}', space=vmem, size = 0x2000, scoped, tag = 'input window, operand 1, single buffered']
    #allocation4 [shape = 's32[1]{0}', space=sflag, size = 0x4, scoped, tag = 'scoped memory for tpu_custom_call.1']
    #allocation5 [shape = 's32[1]{0}', space=sflag, size = 0x4, scoped, tag = 'scoped memory for tpu_custom_call.1']
    #allocation6 [shape = 'u8[65536]{0}', space=vmem, size = 0x10000, scoped, tag = 'input window, operand 2, single buffered']
    #allocation7 [shape = 's32[1]{0}', space=sflag, size = 0x4, scoped, tag = 'scoped memory for tpu_custom_call.1']
    #allocation8 [shape = 'u8[65536]{0}', space=vmem, size = 0x10000, scoped, tag = 'input window, operand 4, single buffered']
    #allocation9 [shape = 'u8[8192]{0}', space=vmem, size = 0x2000, scoped, tag = 'output window, operand 0, single buffered']
    %12 = vsyncpa [#allocation4], 0
    %13 = vsyncpa [#allocation7], 0
    %14 = vsyncpa [#allocation5], 0
    // Predicated region
    $region2: #{tpu_custom_call.1} parent=1 // pred_check
      _
    $region3: #{tpu_custom_call.1} parent=1 // pred_check_branch
      %16 = sbr.rel (0) target = $region5
    $region4: #{tpu_custom_call.1} parent=1 // pred_region
      _
    $region5: #{tpu_custom_call.1} parent=1 // pred_fallthru
      _
    // Predicated region
    $region6: #{tpu_custom_call.1} parent=1 // pred_check
      _
    $region7: #{tpu_custom_call.1} parent=1 // pred_check_branch
      %18 = sbr.rel (0) target = $region9
    $region8: #{tpu_custom_call.1} parent=1 // pred_region
      %s20 = ssub.s32 256, 256
      %21 = vsyncadd [#allocation4], %s20
      %s23 = sshll.u32 [#allocation3], 4
      %s24 = int_to_ptr.vmem [resolvable:$true] %s23
      %26 = dma.hbm_to_vmem [thread:$0]  %s1, 256, %s24, [#allocation4]
    $region9: #{tpu_custom_call.1} parent=1 // pred_fallthru
      _
    // Predicated region
    $region10: #{tpu_custom_call.1} parent=1 // pred_check
      _
    $region11: #{tpu_custom_call.1} parent=1 // pred_check_branch
      %28 = sbr.rel (0) target = $region13
    $region12: #{tpu_custom_call.1} parent=1 // pred_region
      %s30 = ssub.s32 2048, 2048
      %31 = vsyncadd [#allocation7], %s30
      %s32 = sshll.u32 [#allocation6], 4
      %s33 = int_to_ptr.vmem [resolvable:$true] %s32
      %38 = dma.hbm_to_vmem [thread:$0]  %s2, 2048, %s33, [#allocation7], 64, 64, 4
    $region13: #{tpu_custom_call.1} parent=1 // pred_fallthru
      _
    // Predicated region
    $region14: #{tpu_custom_call.1} parent=1 // pred_check
      _
    $region15: #{tpu_custom_call.1} parent=1 // pred_check_branch
      %40 = sbr.rel (0) target = $region17
    $region16: #{tpu_custom_call.1} parent=1 // pred_region
      _
    $region17: #{tpu_custom_call.1} parent=1 // pred_fallthru
      _
    // Predicated region
    $region18: #{tpu_custom_call.1} parent=1 // pred_check
      _
    $region19: #{tpu_custom_call.1} parent=1 // pred_check_branch
      %42 = sbr.rel (0) target = $region21
    $region20: #{tpu_custom_call.1} parent=1 // pred_region
      %s44 = ssub.s32 2048, 2048
      %45 = vsyncadd [#allocation7], %s44
      %s46 = sshll.u32 [#allocation8], 4
      %s47 = int_to_ptr.vmem [resolvable:$true] %s46
      %52 = dma.hbm_to_vmem [thread:$0]  %s4, 2048, %s47, [#allocation7], 128, 128, 8
    $region21: #{tpu_custom_call.1} parent=1 // pred_fallthru
      _
    // Predicated region
    $region22: #{tpu_custom_call.1} parent=1 // pred_check
      _
    $region23: #{tpu_custom_call.1} parent=1 // pred_check_branch
      %54 = sbr.rel (0) target = $region25
    $region24: #{tpu_custom_call.1} parent=1 // pred_region
      _
    $region25: #{tpu_custom_call.1} parent=1 // pred_fallthru
      _
    // Predicated region
    $region26: #{tpu_custom_call.1} parent=1 // pred_check
      _
    $region27: #{tpu_custom_call.1} parent=1 // pred_check_branch
      %56 = sbr.rel (0) target = $region29
    $region28: #{tpu_custom_call.1} parent=1 // pred_region
      %57 = dma.done [#allocation4], 256
    $region29: #{tpu_custom_call.1} parent=1 // pred_fallthru
      _
    // Predicated region
    $region30: #{tpu_custom_call.1} parent=1 // pred_check
      _
    $region31: #{tpu_custom_call.1} parent=1 // pred_check_branch
      %59 = sbr.rel (0) target = $region33
    $region32: #{tpu_custom_call.1} parent=1 // pred_region
      %60 = dma.done [#allocation7], 2048
    $region33: #{tpu_custom_call.1} parent=1 // pred_fallthru
      _
    // Predicated region
    $region34: #{tpu_custom_call.1} parent=1 // pred_check
      _
    $region35: #{tpu_custom_call.1} parent=1 // pred_check_branch
      %62 = sbr.rel (0) target = $region37
    $region36: #{tpu_custom_call.1} parent=1 // pred_region
      %63 = dma.done [#allocation7], 2048
    $region37: #{tpu_custom_call.1} parent=1 // pred_fallthru
      _
    %v65 = vld [vmem:[#allocation3] sm:$0xff]
    %v66 = vld [vmem:[#allocation3 + $0x8] sm:$0xff]
    %s67 = sld [smem:[#allocation2]]
    %v68 = vpack.c.bf16 %v65, %v65
    %v69 = vpack.c.bf16 %v66, %v66
    %v70 = vld [vmem:[#allocation6] sm:$0xf]
    %v71 = vld [vmem:[#allocation6 + $0x4] sm:$0xf]
    %v72 = vld [vmem:[#allocation6 + $0x8] sm:$0xf]
    %v73 = vld [vmem:[#allocation6 + $0xc] sm:$0xf]
    %v74 = vld [vmem:[#allocation6 + $0x10] sm:$0xf]
    %v75 = vld [vmem:[#allocation6 + $0x14] sm:$0xf]
    %v76 = vld [vmem:[#allocation6 + $0x18] sm:$0xf]
    %v77 = vld [vmem:[#allocation6 + $0x1c] sm:$0xf]
    %v78 = vld [vmem:[#allocation6 + $0x20] sm:$0xf]
    %v79 = vld [vmem:[#allocation6 + $0x24] sm:$0xf]
    %v80 = vld [vmem:[#allocation6 + $0x28] sm:$0xf]
    %v81 = vld [vmem:[#allocation6 + $0x2c] sm:$0xf]
    %v82 = vld [vmem:[#allocation6 + $0x30] sm:$0xf]
    %v83 = vld [vmem:[#allocation6 + $0x34] sm:$0xf]
    %v84 = vld [vmem:[#allocation6 + $0x38] sm:$0xf]
    %v85 = vld [vmem:[#allocation6 + $0x3c] sm:$0xf]
    %v86 = vld [vmem:[#allocation6 + $0x40] sm:$0xf]
    %v87 = vld [vmem:[#allocation6 + $0x44] sm:$0xf]
    %v88 = vld [vmem:[#allocation6 + $0x48] sm:$0xf]
    %v89 = vld [vmem:[#allocation6 + $0x4c] sm:$0xf]
    %v90 = vld [vmem:[#allocation6 + $0x50] sm:$0xf]
    %v91 = vld [vmem:[#allocation6 + $0x54] sm:$0xf]
    %v92 = vld [vmem:[#allocation6 + $0x58] sm:$0xf]
    %v93 = vld [vmem:[#allocation6 + $0x5c] sm:$0xf]
    %v94 = vld [vmem:[#allocation6 + $0x60] sm:$0xf]
    %v95 = vld [vmem:[#allocation6 + $0x64] sm:$0xf]
    %v96 = vld [vmem:[#allocation6 + $0x68] sm:$0xf]
    %v97 = vld [vmem:[#allocation6 + $0x6c] sm:$0xf]
    %v98 = vld [vmem:[#allocation6 + $0x70] sm:$0xf]
    %v99 = vld [vmem:[#allocation6 + $0x74] sm:$0xf]
    %v100 = vld [vmem:[#allocation6 + $0x78] sm:$0xf]
    %v101 = vld [vmem:[#allocation6 + $0x7c] sm:$0xf]
    %v102 = vld [vmem:[%s3] sm:$0x1]
    %v104 = vlaneseq
    %v105 = vshrl.u32 %v104, 7
    %v106 = vsub.s32 0, %v105
    %v107 = vrot.slane %v102, %v106
    %v141 = vunpack.c.l.b16 %v70
    %v142 = vunpack.c.l.b16 %v71
    %v143 = vunpack.c.l.b16 %v72
    %v144 = vunpack.c.l.b16 %v73
    %v145 = vunpack.c.l.b16 %v74
    %v146 = vunpack.c.l.b16 %v75
    %v147 = vunpack.c.l.b16 %v76
    %v148 = vunpack.c.l.b16 %v77
    %v149 = vunpack.c.l.b16 %v78
    %v150 = vunpack.c.l.b16 %v79
    %v151 = vunpack.c.l.b16 %v80
    %v152 = vunpack.c.l.b16 %v81
    %v153 = vunpack.c.l.b16 %v82
    %v154 = vunpack.c.l.b16 %v83
    %v155 = vunpack.c.l.b16 %v84
    %v156 = vunpack.c.l.b16 %v85
    %v157 = vunpack.c.l.b16 %v86
    %v158 = vunpack.c.l.b16 %v87
    %v159 = vunpack.c.l.b16 %v88
    %v160 = vunpack.c.l.b16 %v89
    %v161 = vunpack.c.l.b16 %v90
    %v162 = vunpack.c.l.b16 %v91
    %v163 = vunpack.c.l.b16 %v92
    %v164 = vunpack.c.l.b16 %v93
    %v165 = vunpack.c.l.b16 %v94
    %v166 = vunpack.c.l.b16 %v95
    %v167 = vunpack.c.l.b16 %v96
    %v168 = vunpack.c.l.b16 %v97
    %v169 = vunpack.c.l.b16 %v98
    %v170 = vunpack.c.l.b16 %v99
    %v171 = vunpack.c.l.b16 %v100
    %v172 = vunpack.c.l.b16 %v101
    %v173 = vpack.c.b16 %v142, %v141
    %v174 = vpack.c.b16 %v144, %v143
    %v175 = vpack.c.b16 %v146, %v145
    %v176 = vpack.c.b16 %v148, %v147
    %v177 = vpack.c.b16 %v150, %v149
    %v178 = vpack.c.b16 %v152, %v151
    %v179 = vpack.c.b16 %v154, %v153
    %v180 = vpack.c.b16 %v156, %v155
    %v181 = vpack.c.b16 %v158, %v157
    %v182 = vpack.c.b16 %v160, %v159
    %v183 = vpack.c.b16 %v162, %v161
    %v184 = vpack.c.b16 %v164, %v163
    %v185 = vpack.c.b16 %v166, %v165
    %v186 = vpack.c.b16 %v168, %v167
    %v187 = vpack.c.b16 %v170, %v169
    %v188 = vpack.c.b16 %v172, %v171
    %205 = vmatprep.subr.bf16.mxu0 0
    %206 = vmatpush1.bf16.msra.mxu0 %v173
    %207 = vmatprep.subr.bf16.mxu0 0
    %208 = vmatpush1.bf16.msra.mxu0 %v174
    %209 = vmatprep.subr.bf16.mxu0 0
    %210 = vmatpush1.bf16.msra.mxu0 %v175
    %211 = vmatprep.subr.bf16.mxu0 0
    %212 = vmatpush1.bf16.msra.mxu0 %v176
    %213 = vmatprep.subr.bf16.mxu0 0
    %214 = vmatpush1.bf16.msra.mxu0 %v177
    %215 = vmatprep.subr.bf16.mxu0 0
    %216 = vmatpush1.bf16.msra.mxu0 %v178
    %217 = vmatprep.subr.bf16.mxu0 0
    %218 = vmatpush1.bf16.msra.mxu0 %v179
    %219 = vmatprep.subr.bf16.mxu0 0
    %220 = vmatpush1.bf16.msra.mxu0 %v180
    %221 = vmatprep.subr.bf16.mxu0 0
    %222 = vmatpush1.bf16.msra.mxu0 %v181
    %223 = vmatprep.subr.bf16.mxu0 0
    %224 = vmatpush1.bf16.msra.mxu0 %v182
    %225 = vmatprep.subr.bf16.mxu0 0
    %226 = vmatpush1.bf16.msra.mxu0 %v183
    %227 = vmatprep.subr.bf16.mxu0 0
    %228 = vmatpush1.bf16.msra.mxu0 %v184
    %229 = vmatprep.subr.bf16.mxu0 0
    %230 = vmatpush1.bf16.msra.mxu0 %v185
    %231 = vmatprep.subr.bf16.mxu0 0
    %232 = vmatpush1.bf16.msra.mxu0 %v186
    %233 = vmatprep.subr.bf16.mxu0 0
    %234 = vmatpush1.bf16.msra.mxu0 %v187
    %235 = vmatprep.subr.bf16.mxu0 0
    %236 = vmatpush1.bf16.msra.mxu0 %v188
    %237 = vmatprep.mubr.bf16.mxu0 %v69
    %238 = vmatmul.mubr.bf16.gmra.mrb[0].mxu0 %v68
    %v239 = vpop.f32.mrb[0].mxu0
    %v240 = vadd.f32 %v107, %v239
    %v241 = vpop.f32.mrb[0].mxu0
    %v242 = vpop.f32.mrb[0].mxu0
    %v243 = vpop.f32.mrb[0].mxu0
    %244 = vdwg.mxu0
    %v245 = vmul.f32 %v240, 0.05
    %v246 = vmax.f32 %v240, %v245
    %v247 = vpack.c.bf16 %v246, %v246
    %v248 = vld [vmem:[#allocation8] sm:$0xff]
    %v249 = vld [vmem:[#allocation8 + $0x8] sm:$0xff]
    %v250 = vld [vmem:[#allocation8 + $0x10] sm:$0xff]
    %v251 = vld [vmem:[#allocation8 + $0x18] sm:$0xff]
    %v252 = vld [vmem:[#allocation8 + $0x20] sm:$0xff]
    %v253 = vld [vmem:[#allocation8 + $0x28] sm:$0xff]
    %v254 = vld [vmem:[#allocation8 + $0x30] sm:$0xff]
    %v255 = vld [vmem:[#allocation8 + $0x38] sm:$0xff]
    %v256 = vld [vmem:[#allocation8 + $0x40] sm:$0xff]
    %v257 = vld [vmem:[#allocation8 + $0x48] sm:$0xff]
    %v258 = vld [vmem:[#allocation8 + $0x50] sm:$0xff]
    %v259 = vld [vmem:[#allocation8 + $0x58] sm:$0xff]
    %v260 = vld [vmem:[#allocation8 + $0x60] sm:$0xff]
    %v261 = vld [vmem:[#allocation8 + $0x68] sm:$0xff]
    %v262 = vld [vmem:[#allocation8 + $0x70] sm:$0xff]
    %v263 = vld [vmem:[#allocation8 + $0x78] sm:$0xff]
    %v264 = vld [vmem:[%s5] sm:$0x3]
    %v266 = vlaneseq
    %v267 = vshrl.u32 %v266, 7
    %v268 = vsub.s32 0, %v267
    %v269 = vrot.slane %v264, %v268
    %v270 = vlaneseq
    %v271 = vshrl.u32 %v270, 7
    %v272 = vsub.s32 1, %v271
    %v273 = vrot.slane %v264, %v272
    %v292 = vunpack.c.l.b16 %v248
    %v293 = vunpack.c.h.b16 %v248
    %v294 = vunpack.c.l.b16 %v249
    %v295 = vunpack.c.h.b16 %v249
    %v296 = vunpack.c.l.b16 %v250
    %v297 = vunpack.c.h.b16 %v250
    %v298 = vunpack.c.l.b16 %v251
    %v299 = vunpack.c.h.b16 %v251
    %v300 = vunpack.c.l.b16 %v252
    %v301 = vunpack.c.h.b16 %v252
    %v302 = vunpack.c.l.b16 %v253
    %v303 = vunpack.c.h.b16 %v253
    %v304 = vunpack.c.l.b16 %v254
    %v305 = vunpack.c.h.b16 %v254
    %v306 = vunpack.c.l.b16 %v255
    %v307 = vunpack.c.h.b16 %v255
    %v308 = vunpack.c.l.b16 %v256
    %v309 = vunpack.c.h.b16 %v256
    %v310 = vunpack.c.l.b16 %v257
    %v311 = vunpack.c.h.b16 %v257
    %v312 = vunpack.c.l.b16 %v258
    %v313 = vunpack.c.h.b16 %v258
    %v314 = vunpack.c.l.b16 %v259
    %v315 = vunpack.c.h.b16 %v259
    %v316 = vunpack.c.l.b16 %v260
    %v317 = vunpack.c.h.b16 %v260
    %v318 = vunpack.c.l.b16 %v261
    %v319 = vunpack.c.h.b16 %v261
    %v320 = vunpack.c.l.b16 %v262
    %v321 = vunpack.c.h.b16 %v262
    %v322 = vunpack.c.l.b16 %v263
    %v323 = vunpack.c.h.b16 %v263
    %v324 = vpack.c.b16 %v294, %v292
    %v325 = vpack.c.b16 %v295, %v293
    %v326 = vpack.c.b16 %v298, %v296
    %v327 = vpack.c.b16 %v299, %v297
    %v328 = vpack.c.b16 %v302, %v300
    %v329 = vpack.c.b16 %v303, %v301
    %v330 = vpack.c.b16 %v306, %v304
    %v331 = vpack.c.b16 %v307, %v305
    %v332 = vpack.c.b16 %v310, %v308
    %v333 = vpack.c.b16 %v311, %v309
    %v334 = vpack.c.b16 %v314, %v312
    %v335 = vpack.c.b16 %v315, %v313
    %v336 = vpack.c.b16 %v318, %v316
    %v337 = vpack.c.b16 %v319, %v317
    %v338 = vpack.c.b16 %v322, %v320
    %v339 = vpack.c.b16 %v323, %v321
    %356 = vmatprep.subr.bf16.mxu0 %v325
    %357 = vmatpush1.bf16.msra.mxu0 %v324
    %358 = vmatprep.subr.bf16.mxu0 %v327
    %359 = vmatpush1.bf16.msra.mxu0 %v326
    %360 = vmatprep.subr.bf16.mxu0 %v329
    %361 = vmatpush1.bf16.msra.mxu0 %v328
    %362 = vmatprep.subr.bf16.mxu0 %v331
    %363 = vmatpush1.bf16.msra.mxu0 %v330
    %364 = vmatprep.subr.bf16.mxu0 %v333
    %365 = vmatpush1.bf16.msra.mxu0 %v332
    %366 = vmatprep.subr.bf16.mxu0 %v335
    %367 = vmatpush1.bf16.msra.mxu0 %v334
    %368 = vmatprep.subr.bf16.mxu0 %v337
    %369 = vmatpush1.bf16.msra.mxu0 %v336
    %370 = vmatprep.subr.bf16.mxu0 %v339
    %371 = vmatpush1.bf16.msra.mxu0 %v338
    %372 = vmatprep.subr.bf16.mxu0 0
    %373 = vmatpush1.bf16.msra.mxu0 0
    %374 = vmatprep.subr.bf16.mxu0 0
    %375 = vmatpush1.bf16.msra.mxu0 0
    %376 = vmatprep.subr.bf16.mxu0 0
    %377 = vmatpush1.bf16.msra.mxu0 0
    %378 = vmatprep.subr.bf16.mxu0 0
    %379 = vmatpush1.bf16.msra.mxu0 0
    %380 = vmatprep.subr.bf16.mxu0 0
    %381 = vmatpush1.bf16.msra.mxu0 0
    %382 = vmatprep.subr.bf16.mxu0 0
    %383 = vmatpush1.bf16.msra.mxu0 0
    %384 = vmatprep.subr.bf16.mxu0 0
    %385 = vmatpush1.bf16.msra.mxu0 0
    %386 = vmatprep.subr.bf16.mxu0 0
    %387 = vmatpush1.bf16.msra.mxu0 0
    %388 = vmatprep.mubr.bf16.mxu0 0
    %389 = vmatmul.mubr.bf16.gmra.mrb[0].mxu0 %v247
    %v390 = vpop.f32.mrb[0].mxu0
    %v391 = vadd.f32 %v269, %v390
    %v392 = vpop.f32.mrb[0].mxu0
    %v393 = vadd.f32 %v273, %v392
    %v394 = vpop.f32.mrb[0].mxu0
    %v395 = vpop.f32.mrb[0].mxu0
    %396 = vdwg.mxu0
    %v397 = vstv %s67
    %v398 = vmul.f32 %v391, %v397
    %v399 = vmul.f32 %v393, %v397
    %v400 = vadd.f32 %v398, %v65
    %v401 = vadd.f32 %v399, %v66
    %402 = vst [vmem:[#allocation9] sm:$0xff] %v400
    %403 = vst [vmem:[#allocation9 + $0x8] sm:$0xff] %v401
    // Predicated region
    $region38: #{tpu_custom_call.1} parent=1 // pred_check
      _
    $region39: #{tpu_custom_call.1} parent=1 // pred_check_branch
      %405 = sbr.rel (0) target = $region41
    $region40: #{tpu_custom_call.1} parent=1 // pred_region
      %s407 = ssub.s32 256, 256
      %408 = vsyncadd [#allocation5], %s407
      %s410 = sshll.u32 [#allocation9], 4
      %s411 = int_to_ptr.vmem [resolvable:$true] %s410
      %413 = dma.vmem_to_hbm [thread:$0]  %s411, 256, %s6, [#allocation5]
    $region41: #{tpu_custom_call.1} parent=1 // pred_fallthru
      _
    // Predicated region
    $region42: #{tpu_custom_call.1} parent=1 // pred_check
      _
    $region43: #{tpu_custom_call.1} parent=1 // pred_check_branch
      %415 = sbr.rel (0) target = $region45
    $region44: #{tpu_custom_call.1} parent=1 // pred_region
      %416 = dma.done [#allocation5], 256
    $region45: #{tpu_custom_call.1} parent=1 // pred_fallthru
      _
    %417 = vsyncpa [#allocation4], 1
    %418 = vsyncpa [#allocation7], 1
    %419 = vsyncpa [#allocation5], 1

</llo_original>
